<compile_context>
chip_gen: v7x
topology: tpu7x:2x2x1
jax: 0.10.0
libtpu: 0.0.40
codegen_flags: <defaults>
</compile_context>

<pallas_src>
import functools

import jax
import jax.numpy as jnp
import numpy as np
from jax.experimental import pallas as pl
from jax.experimental.pallas import tpu as pltpu


# ---------------------------------------------------------------------------
# Small helpers
# ---------------------------------------------------------------------------
def _tile_sum(x):
    # (R, L) -> (1, 1): sublane reduce then lane reduce (XLU slot, off the VPU path).
    return jnp.sum(jnp.sum(x, axis=0, keepdims=True), axis=1, keepdims=True)


def _tile_max(x):
    return jnp.max(jnp.max(x, axis=0, keepdims=True), axis=1, keepdims=True)


def _flat_row_col(rows, lane_w, row_offset, width):
    """Original (row, col) of every element of a lane-dense (rows, 128) tile.

    Only used when `width` is a power of two, so the f32 divide / floor below
    is exact (flat < 2**24 for any sane image size)."""
    sub = jax.lax.broadcasted_iota(jnp.int32, (rows, lane_w), 0) + row_offset
    lane = jax.lax.broadcasted_iota(jnp.int32, (rows, lane_w), 1)
    flat = (sub * lane_w + lane).astype(jnp.float32)
    row = jnp.floor(flat * (1.0 / float(width)))
    col = flat - row * float(width)
    return row, col


def _chip_defaults():
    """(vmem_limit_bytes, use_bf16_logs) tuned per TPU generation."""
    kind = ""
    try:
        kind = jax.devices()[0].device_kind.lower()
    except Exception:
        pass
    is_v7 = ("7x" in kind) or ("v7" in kind) or ("tpu7" in kind)
    is_v6 = ("v6" in kind) or ("trillium" in kind)
    vmem_cap = (64 << 20) if is_v7 else (128 << 20)      # v7x: 64 MiB per core
    try:  # prefer the exact per-core capacity when the query is available
        cap = getattr(pltpu.get_tpu_info(), "vmem_capacity_bytes", None)
        if cap:
            vmem_cap = int(cap)
    except Exception:
        pass
    vmem_limit = min(100 << 20, (vmem_cap * 3) // 4)     # ~96 MiB v5e/v6e, 48 MiB v7x
    use_bf16_logs = bool(is_v6 or is_v7)                 # bf16 EUP pipe: v6e/v7x only
    return vmem_limit, use_bf16_logs


def _compiler_params(vmem_limit_bytes):
    return pltpu.CompilerParams(
        dimension_semantics=("parallel", "arbitrary"),
        vmem_limit_bytes=int(vmem_limit_bytes))


def _pick_tile_rows(plane_rows, lane_w, itemsize, budget_bytes):
    """Largest row count (multiple of 8, or the full plane) fitting the budget."""
    if plane_rows * lane_w * itemsize <= budget_bytes or plane_rows < 8:
        return plane_rows
    best = None
    for cand in range(8, plane_rows, 8):
        if plane_rows % cand == 0 and cand * lane_w * itemsize <= budget_bytes:
            best = cand
    if best is not None:
        return best
    for cand in range(8, plane_rows, 8):
        if plane_rows % cand == 0:
            return cand
    # TODO(synk): huge planes with odd row counts keep the full plane as one block.
    return plane_rows


# ---------------------------------------------------------------------------
# Fallback kernel: per-batch centroid of the tied-max pixels (online reduction)
# ---------------------------------------------------------------------------
def _centroid_kernel(t_ref, out_ref, m_sc, c_sc, si_sc, sj_sc, *,
                     tile_rows, lane_w, width, flat_layout):
    h = pl.program_id(1)

    @pl.when(h == 0)
    def _init():
        m_sc[...] = jnp.full_like(m_sc, -jnp.inf)
        c_sc[...] = jnp.zeros_like(c_sc)
        si_sc[...] = jnp.zeros_like(si_sc)
        sj_sc[...] = jnp.zeros_like(sj_sc)

    t = t_ref[...].astype(jnp.float32)          # exact cast: ties stay exact
    tile_max = _tile_max(t)                     # (1, 1)
    m_old = m_sc[...]
    m_new = jnp.maximum(m_old, tile_max)
    mask = (t == m_new).astype(jnp.float32)

    if flat_layout:
        rowf, colf = _flat_row_col(tile_rows, lane_w, h * tile_rows, width)
        t_cnt = _tile_sum(mask)
        t_si = _tile_sum(mask * rowf)
        t_sj = _tile_sum(mask * colf)
    else:
        # Separable: one lane reduce + one sublane reduce instead of three
        # full-tile multiply+reduce passes.
        rvec = (jax.lax.broadcasted_iota(jnp.int32, (tile_rows, 1), 0)
                + h * tile_rows).astype(jnp.float32)
        cvec = jax.lax.broadcasted_iota(jnp.int32, (1, lane_w), 1).astype(jnp.float32)
        row_cnt = jnp.sum(mask, axis=1, keepdims=True)          # (tile_rows, 1)
        col_cnt = jnp.sum(mask, axis=0, keepdims=True)          # (1, lane_w)
        t_cnt = jnp.sum(row_cnt, axis=0, keepdims=True)
        t_si = jnp.sum(row_cnt * rvec, axis=0, keepdims=True)
        t_sj = jnp.sum(col_cnt * cvec, axis=1, keepdims=True)

    is_new = tile_max > m_old                   # strictly larger max resets the sums
    c_sc[...] = jnp.where(is_new, t_cnt, c_sc[...] + t_cnt)
    si_sc[...] = jnp.where(is_new, t_si, si_sc[...] + t_si)
    sj_sc[...] = jnp.where(is_new, t_sj, sj_sc[...] + t_sj)
    m_sc[...] = m_new

    @pl.when(h == pl.num_programs(1) - 1)
    def _finalize():
        inv_cnt = 1.0 / c_sc[...]
        cx = si_sc[...] * inv_cnt
        cy = sj_sc[...] * inv_cnt
        lane = jax.lax.broadcasted_iota(jnp.int32, out_ref.shape, 1)
        out_ref[...] = jnp.where(lane == 0, cx, jnp.where(lane == 1, cy, 0.0))


def _centroid_call(t2d, tile_rows, *, flat_layout, width, cp):
    B, plane_rows, lane_w = t2d.shape
    kernel = functools.partial(_centroid_kernel, tile_rows=tile_rows, lane_w=lane_w,
                               width=width, flat_layout=flat_layout)
    return pl.pallas_call(
        kernel,
        out_shape=jax.ShapeDtypeStruct((B, 1, 128), jnp.float32),
        grid_spec=pltpu.PrefetchScalarGridSpec(
            num_scalar_prefetch=0,
            grid=(B, plane_rows // tile_rows),
            in_specs=[pl.BlockSpec((None, tile_rows, lane_w), lambda b, h: (b, h, 0))],
            out_specs=pl.BlockSpec((None, 1, 128), lambda b, h: (b, 0, 0)),
            scratch_shapes=[pltpu.VMEM((1, 1), jnp.float32)] * 4),
        compiler_params=cp,
    )(t2d)


# ---------------------------------------------------------------------------
# Main kernel: (optionally fused centroid +) weighted BCE partial sums
# ---------------------------------------------------------------------------
def _loss_kernel(*refs, tile_rows, lane_w, plane_rows, width,
                 flat_layout, fused, use_bf16_logs):
    if fused:
        x_ref, t_ref, out_ref, acc_sc, cx_sc, cy_sc = refs
    else:
        x_ref, t_ref, cent_ref, out_ref, acc_sc, cx_sc, cy_sc = refs

    h = pl.program_id(1)

    @pl.when(h == 0)
    def _init():
        acc_sc[...] = jnp.zeros_like(acc_sc)
        if fused:
            # Centroid of the tied-max pixels from the resident target plane
            # (once per batch; hides under the per-tile EUP work below).
            tp = t_ref[...].astype(jnp.float32)
            mx = _tile_max(tp)
            mask = (tp == mx).astype(jnp.float32)
            if flat_layout:
                rowf, colf = _flat_row_col(plane_rows, lane_w, 0, width)
                cnt = _tile_sum(mask)
                si = _tile_sum(mask * rowf)
                sj = _tile_sum(mask * colf)
            else:
                rvec = jax.lax.broadcasted_iota(
                    jnp.int32, (plane_rows, 1), 0).astype(jnp.float32)
                cvec = jax.lax.broadcasted_iota(
                    jnp.int32, (1, lane_w), 1).astype(jnp.float32)
                row_cnt = jnp.sum(mask, axis=1, keepdims=True)
                col_cnt = jnp.sum(mask, axis=0, keepdims=True)
                cnt = jnp.sum(row_cnt, axis=0, keepdims=True)
                si = jnp.sum(row_cnt * rvec, axis=0, keepdims=True)
                sj = jnp.sum(col_cnt * cvec, axis=1, keepdims=True)
            inv_cnt = 1.0 / cnt
            cx_sc[...] = si * inv_cnt
            cy_sc[...] = sj * inv_cnt
        else:
            cx_sc[...] = cent_ref[0:1, 0:1]
            cy_sc[...] = cent_ref[0:1, 1:2]

    x = x_ref[...].astype(jnp.float32)                    # (tile_rows, lane_w)
    if fused:
        if tile_rows == plane_rows:
            t = t_ref[...].astype(jnp.float32)
        else:
            row0 = pl.multiple_of(h * tile_rows, 8)
            t = t_ref[pl.ds(row0, tile_rows), :].astype(jnp.float32)
    else:
        t = t_ref[...].astype(jnp.float32)

    cx = cx_sc[...]                                       # (1, 1)
    cy = cy_sc[...]

    if flat_layout:
        rowf, colf = _flat_row_col(tile_rows, lane_w, h * tile_rows, width)
        dr = rowf - cx
        dc = colf - cy
        dist2 = dr * dr + dc * dc
    else:
        # Separable index math: tiny (tile_rows,1)/(1,lane_w) vectors, a single
        # full-tile broadcast add.
        rvec = (jax.lax.broadcasted_iota(jnp.int32, (tile_rows, 1), 0)
                + h * tile_rows).astype(jnp.float32)
        cvec = jax.lax.broadcasted_iota(jnp.int32, (1, lane_w), 1).astype(jnp.float32)
        dr = rvec - cx
        dc = cvec - cy
        dist2 = dr * dr + dc * dc                         # broadcast -> full tile

    # weight / W  (the * W factor is folded into the wrapper's final scalar)
    inv_w = pl.reciprocal(jnp.sqrt(dist2) + 1.0, approx=True)

    if use_bf16_logs:
        # v6e/v7x fast path: logs on the bf16 EUP pipe.  1 - x is computed in
        # f32 BEFORE the bf16 cast so it never cancels at bf16 resolution.
        one_minus_x = 1.0 - x
        log_x = jnp.maximum(jnp.log(x.astype(jnp.bfloat16)).astype(jnp.float32), -100.0)
        log_1mx = jnp.maximum(
            jnp.log(one_minus_x.astype(jnp.bfloat16)).astype(jnp.float32), -100.0)
    else:
        # torch.nn.BCELoss semantics: clamp AFTER the log so 0 * (-100) = 0.
        log_x = jnp.maximum(jnp.log(x), -100.0)
        log_1mx = jnp.maximum(jnp.log(1.0 - x), -100.0)

    bce = -(t * log_x + (1.0 - t) * log_1mx)
    acc_sc[...] = acc_sc[...] + _tile_sum(inv_w * bce)

    @pl.when(h == pl.num_programs(1) - 1)
    def _finalize():
        out_ref[...] = acc_sc[...]                        # one lane-dense (1,128) store


def _loss_call(x2d, t2d, cents, tile_rows, *, fused, flat_layout, width,
               use_bf16_logs, cp):
    B, plane_rows, lane_w = t2d.shape
    kernel = functools.partial(
        _loss_kernel, tile_rows=tile_rows, lane_w=lane_w, plane_rows=plane_rows,
        width=width, flat_layout=flat_layout, fused=fused,
        use_bf16_logs=use_bf16_logs)

    in_specs = [pl.BlockSpec((None, tile_rows, lane_w), lambda b, h: (b, h, 0))]
    operands = [x2d]
    if fused:
        # Target plane resident across the whole h-reduction (fetched once/batch).
        in_specs.append(pl.BlockSpec((None, plane_rows, lane_w), lambda b, h: (b, 0, 0)))
        operands.append(t2d)
    else:
        in_specs.append(pl.BlockSpec((None, tile_rows, lane_w), lambda b, h: (b, h, 0)))
        operands.append(t2d)
        in_specs.append(pl.BlockSpec((None, 1, 128), lambda b, h: (b, 0, 0)))
        operands.append(cents)

    return pl.pallas_call(
        kernel,
        out_shape=jax.ShapeDtypeStruct((B, 1, 128), jnp.float32),
        grid_spec=pltpu.PrefetchScalarGridSpec(
            num_scalar_prefetch=0,
            grid=(B, plane_rows // tile_rows),
            in_specs=in_specs,
            out_specs=pl.BlockSpec((None, 1, 128), lambda b, h: (b, 0, 0)),
            scratch_shapes=[pltpu.VMEM((1, 128), jnp.float32),   # partial sum
                            pltpu.VMEM((1, 1), jnp.float32),     # cx
                            pltpu.VMEM((1, 1), jnp.float32)]),   # cy
        compiler_params=cp,
    )(*operands)


# ---------------------------------------------------------------------------
# Public wrapper (forward pass of the PyTorch `floss` module)
# ---------------------------------------------------------------------------
def floss(input, target, *, use_bf16_logs=None, tile_rows=None, force_two_pass=False):
    if input.shape != target.shape:
        raise ValueError("input / target shape mismatch")
    B, C, H, W = target.shape
    if C != 1 or H != W:
        raise ValueError(f"floss expects NCHW with C == 1 and H == W, got {target.shape}")
    n_elem = B * C * H * W

    # ---- layout: lane-dense flattening when the width under-fills the lanes ----
    if W % 128 == 0:
        flat_layout = False
        plane_rows, lane_w = H, W
    elif (H * W) % 128 == 0 and (W & (W - 1)) == 0:
        flat_layout = True
        plane_rows, lane_w = (H * W) // 128, 128
    else:
        # TODO(synk): non-power-of-two widths < 128 stay lane-padded ((H, W) blocks).
        flat_layout = False
        plane_rows, lane_w = H, W
    # Native-dtype, contiguous (free) reshape — no wrapper-side f32 pre-cast.
    x2d = input.reshape(B, plane_rows, lane_w)
    t2d = target.reshape(B, plane_rows, lane_w)

    vmem_limit, bf16_default = _chip_defaults()
    if use_bf16_logs is None:
        use_bf16_logs = bf16_default
    cp = _compiler_params(vmem_limit)

    tile_budget = min(8 << 20, vmem_limit // 8)
    itemsize = max(x2d.dtype.itemsize, t2d.dtype.itemsize)
    th = tile_rows if tile_rows is not None else _pick_tile_rows(
        plane_rows, lane_w, itemsize, tile_budget)
    if plane_rows % th != 0 or (th != plane_rows and th % 8 != 0):
        raise ValueError(f"tile_rows={th} incompatible with plane_rows={plane_rows}")

    # Fuse the centroid pass whenever the target plane can stay resident in VMEM.
    t_plane_bytes = plane_rows * lane_w * t2d.dtype.itemsize
    x_tile_bytes = th * lane_w * x2d.dtype.itemsize
    fused = (not force_two_pass) and (
        2 * t_plane_bytes + 2 * x_tile_bytes + (2 << 20) <= (vmem_limit * 4) // 5)

    if fused:
        psums = _loss_call(x2d, t2d, None, th, fused=True, flat_layout=flat_layout,
                           width=W, use_bf16_logs=use_bf16_logs, cp=cp)
    else:
        cents = _centroid_call(t2d, th, flat_layout=flat_layout, width=W, cp=cp)
        psums = _loss_call(x2d, t2d, cents, th, fused=False, flat_layout=flat_layout,
                           width=W, use_bf16_logs=use_bf16_logs, cp=cp)

    # TODO(synk): v7x small-B dual-TensorCore split of the h-reduction not implemented.
    # The weight's *W factor and the 1/N mean fold into one scalar multiply here.
    return jnp.sum(psums[:, 0, 0]) * (jnp.float32(W) / jnp.float32(n_elem))


# ---------------------------------------------------------------------------
# Pure-JAX reference (mirrors the PyTorch/numpy module exactly)
# ---------------------------------------------------------------------------
def floss_reference(x, t):
    B, C, H, W = t.shape
    x = x.astype(jnp.float32)
    t = t.astype(jnp.float32)
    tm = t.reshape(B, H, W)
    mx = jnp.max(tm, axis=(1, 2), keepdims=True)
    mask = (tm == mx).astype(jnp.float32)
    cnt = jnp.sum(mask, axis=(1, 2))
    rows = jnp.arange(H, dtype=jnp.float32)[None, :, None]
    cols = jnp.arange(W, dtype=jnp.float32)[None, None, :]
    cx = jnp.sum(mask * rows, axis=(1, 2)) / cnt
    cy = jnp.sum(mask * cols, axis=(1, 2)) / cnt
    a = jnp.arange(W, dtype=jnp.float32)[None, :, None] - cx[:, None, None]
    b = jnp.arange(W, dtype=jnp.float32)[None, None, :] - cy[:, None, None]
    dist = jnp.sqrt(a * a + b * b)
    weight = (W / (dist + 1.0))[:, None, :, :]
    log_x = jnp.maximum(jnp.log(x), -100.0)
    log_1mx = jnp.maximum(jnp.log(1.0 - x), -100.0)
    bce = -(t * log_x + (1.0 - t) * log_1mx)
    return jnp.mean(weight * bce)


def _make_inputs(key, B, H, W):
    k1, k2 = jax.random.split(key)
    # Quantized target -> the max value is tied at several pixels (exercises the
    # np.where(...).mean() tie-averaging path); input strictly inside (0, 1).
    target = jnp.round(jax.random.uniform(k1, (B, 1, H, W), dtype=jnp.float32) * 4.0) / 4.0
    inp = jax.random.uniform(k2, (B, 1, H, W), dtype=jnp.float32, minval=0.01, maxval=0.99)
    return inp, target


if __name__ == "__main__":
    key = jax.random.PRNGKey(0)
    k_small, k_big = jax.random.split(key)

    fused_fn = jax.jit(floss)
    two_pass_fn = jax.jit(functools.partial(floss, force_two_pass=True))

    # 1) W < 128 -> lane-dense flattened layout; fused path + two-pass fallback.
    inp_s, tgt_s = _make_inputs(k_small, 2, 16, 16)
    ref_s = np.asarray(jax.block_until_ready(floss_reference(inp_s, tgt_s)))
    out_fused_s = np.asarray(jax.block_until_ready(fused_fn(inp_s, tgt_s)))
    out_split_s = np.asarray(jax.block_until_ready(two_pass_fn(inp_s, tgt_s)))
    np.testing.assert_allclose(out_fused_s, ref_s, rtol=2e-2, atol=1e-4)
    np.testing.assert_allclose(out_split_s, ref_s, rtol=2e-2, atol=1e-4)

    # 2) W % 128 == 0 -> native (H, W) tiles with separable index math.
    inp_b, tgt_b = _make_inputs(k_big, 2, 128, 128)
    ref_b = np.asarray(jax.block_until_ready(floss_reference(inp_b, tgt_b)))
    out_fused_b = np.asarray(jax.block_until_ready(fused_fn(inp_b, tgt_b)))
    out_split_b = np.asarray(jax.block_until_ready(two_pass_fn(inp_b, tgt_b)))
    np.testing.assert_allclose(out_fused_b, ref_b, rtol=2e-2, atol=1e-4)
    np.testing.assert_allclose(out_split_b, ref_b, rtol=2e-2, atol=1e-4)

    print("KERNEL_OK")
</pallas_src>

<mosaic_0001>
module attributes {stable_mosaic.version = 11 : i64} {
  func.func @_loss_kernel(%arg0: i32, %arg1: i32, %arg2: memref<1x2x128xf32, #tpu.memory_space<vmem>>, %arg3: memref<1x2x128xf32, #tpu.memory_space<vmem>>, %arg4: memref<1x1x128xf32, #tpu.memory_space<vmem>>, %arg5: memref<1x128xf32, #tpu.memory_space<vmem>>, %arg6: memref<1x1xf32, #tpu.memory_space<vmem>>, %arg7: memref<1x1xf32, #tpu.memory_space<vmem>>) attributes {dimension_semantics = [#tpu.dimension_semantics<parallel>, #tpu.dimension_semantics<arbitrary>], iteration_bounds = array<i64: 2, 1>, scalar_prefetch = 0 : i64, scratch_operands = 3 : i64, tpu.core_type = #tpu.core_type<tc>, window_params = [{transform_indices = @transform_0, window_bounds = array<i64: 1, 2, 128>}, {transform_indices = @transform_1, window_bounds = array<i64: 1, 2, 128>}, {transform_indices = @transform_2, window_bounds = array<i64: 1, 1, 128>}]} {
    %c0_i32 = arith.constant 0 : i32
    %0 = arith.cmpi eq, %arg1, %c0_i32 : i32
    %1 = arith.extui %0 : i1 to i32
    %c0_i32_0 = arith.constant 0 : i32
    %2 = arith.cmpi ne, %1, %c0_i32_0 : i32
    scf.if %2 {
      %cst_25 = arith.constant 0.000000e+00 : f32
      %62 = vector.broadcast %cst_25 : f32 to vector<1x128xf32>
      %c0_26 = arith.constant 0 : index
      %c0_27 = arith.constant 0 : index
      %63 = vector.load %arg5[%c0_26, %c0_27] : memref<1x128xf32, #tpu.memory_space<vmem>>, vector<1x128xf32>
      tpu.vector_store %arg5[%c0_26, %c0_27], %62 {strides = array<i32>} : memref<1x128xf32, #tpu.memory_space<vmem>>, vector<1x128xf32>,
      %c0_28 = arith.constant 0 : index
      %c0_29 = arith.constant 0 : index
      %c0_30 = arith.constant 0 : index
      %64 = vector.load %arg3[%c0_28, %c0_29, %c0_30] : memref<1x2x128xf32, #tpu.memory_space<vmem>>, vector<1x2x128xf32>
      %65 = vector.shape_cast %64 : vector<1x2x128xf32> to vector<2x128xf32>
      %cst_31 = arith.constant dense<0xFF800000> : vector<128xf32>
      %66 = vector.multi_reduction <maximumf>, %65, %cst_31 [0] : vector<2x128xf32> to vector<128xf32>
      %67 = vector.shape_cast %66 : vector<128xf32> to vector<1x128xf32>
      %cst_32 = arith.constant dense<0xFF800000> : vector<1xf32>
      %68 = vector.multi_reduction <maximumf>, %67, %cst_32 [1] : vector<1x128xf32> to vector<1xf32>
      %69 = vector.shape_cast %68 : vector<1xf32> to vector<1x1xf32>
      %70 = vector.broadcast %69 : vector<1x1xf32> to vector<2x128xf32>
      %71 = arith.cmpf oeq, %65, %70 : vector<2x128xf32>
      %72 = arith.extui %71 : vector<2x128xi1> to vector<2x128xi32>
      %73 = arith.sitofp %72 : vector<2x128xi32> to vector<2x128xf32>
      %74 = tpu.iota {dimensions = array<i32: 0>} : vector<2x128xi32>
      %c0_i32_33 = arith.constant 0 : i32
      %75 = vector.broadcast %c0_i32_33 : i32 to vector<2x128xi32>
      %76 = arith.addi %74, %75 : vector<2x128xi32>
      %77 = tpu.iota {dimensions = array<i32: 1>} : vector<2x128xi32>
      %c128_i32_34 = arith.constant 128 : i32
      %78 = vector.broadcast %c128_i32_34 : i32 to vector<2x128xi32>
      %79 = arith.muli %76, %78 : vector<2x128xi32>
      %80 = arith.addi %79, %77 : vector<2x128xi32>
      %81 = arith.sitofp %80 : vector<2x128xi32> to vector<2x128xf32>
      %cst_35 = arith.constant 6.250000e-02 : f32
      %82 = vector.broadcast %cst_35 : f32 to vector<2x128xf32>
      %83 = arith.mulf %81, %82 : vector<2x128xf32>
      %84 = math.floor %83 : vector<2x128xf32>
      %cst_36 = arith.constant 1.600000e+01 : f32
      %85 = vector.broadcast %cst_36 : f32 to vector<2x128xf32>
      %86 = arith.mulf %84, %85 : vector<2x128xf32>
      %87 = arith.subf %81, %86 : vector<2x128xf32>
      %cst_37 = arith.constant dense<0.000000e+00> : vector<128xf32>
      %88 = vector.multi_reduction <add>, %73, %cst_37 [0] : vector<2x128xf32> to vector<128xf32>
      %89 = vector.shape_cast %88 : vector<128xf32> to vector<1x128xf32>
      %cst_38 = arith.constant dense<0.000000e+00> : vector<1xf32>
      %90 = vector.multi_reduction <add>, %89, %cst_38 [1] : vector<1x128xf32> to vector<1xf32>
      %91 = vector.shape_cast %90 : vector<1xf32> to vector<1x1xf32>
      %92 = arith.mulf %73, %84 : vector<2x128xf32>
      %cst_39 = arith.constant dense<0.000000e+00> : vector<128xf32>
      %93 = vector.multi_reduction <add>, %92, %cst_39 [0] : vector<2x128xf32> to vector<128xf32>
      %94 = vector.shape_cast %93 : vector<128xf32> to vector<1x128xf32>
      %cst_40 = arith.constant dense<0.000000e+00> : vector<1xf32>
      %95 = vector.multi_reduction <add>, %94, %cst_40 [1] : vector<1x128xf32> to vector<1xf32>
      %96 = vector.shape_cast %95 : vector<1xf32> to vector<1x1xf32>
      %97 = arith.mulf %73, %87 : vector<2x128xf32>
      %cst_41 = arith.constant dense<0.000000e+00> : vector<128xf32>
      %98 = vector.multi_reduction <add>, %97, %cst_41 [0] : vector<2x128xf32> to vector<128xf32>
      %99 = vector.shape_cast %98 : vector<128xf32> to vector<1x128xf32>
      %cst_42 = arith.constant dense<0.000000e+00> : vector<1xf32>
      %100 = vector.multi_reduction <add>, %99, %cst_42 [1] : vector<1x128xf32> to vector<1xf32>
      %101 = vector.shape_cast %100 : vector<1xf32> to vector<1x1xf32>
      %cst_43 = arith.constant 1.000000e+00 : f32
      %102 = vector.broadcast %cst_43 : f32 to vector<1x1xf32>
      %103 = arith.divf %102, %91 : vector<1x1xf32>
      %104 = arith.mulf %96, %103 : vector<1x1xf32>
      %c0_44 = arith.constant 0 : index
      %c0_45 = arith.constant 0 : index
      %105 = vector.load %arg6[%c0_44, %c0_45] : memref<1x1xf32, #tpu.memory_space<vmem>>, vector<1x1xf32>
      tpu.vector_store %arg6[%c0_44, %c0_45], %104 {strides = array<i32>} : memref<1x1xf32, #tpu.memory_space<vmem>>, vector<1x1xf32>,
      %106 = arith.mulf %101, %103 : vector<1x1xf32>
      %c0_46 = arith.constant 0 : index
      %c0_47 = arith.constant 0 : index
      %107 = vector.load %arg7[%c0_46, %c0_47] : memref<1x1xf32, #tpu.memory_space<vmem>>, vector<1x1xf32>
      tpu.vector_store %arg7[%c0_46, %c0_47], %106 {strides = array<i32>} : memref<1x1xf32, #tpu.memory_space<vmem>>, vector<1x1xf32>,
    } else {
    }
    %c0 = arith.constant 0 : index
    %c0_1 = arith.constant 0 : index
    %c0_2 = arith.constant 0 : index
    %3 = vector.load %arg2[%c0, %c0_1, %c0_2] : memref<1x2x128xf32, #tpu.memory_space<vmem>>, vector<1x2x128xf32>
    %4 = vector.shape_cast %3 : vector<1x2x128xf32> to vector<2x128xf32>
    %c0_3 = arith.constant 0 : index
    %c0_4 = arith.constant 0 : index
    %c0_5 = arith.constant 0 : index
    %5 = vector.load %arg3[%c0_3, %c0_4, %c0_5] : memref<1x2x128xf32, #tpu.memory_space<vmem>>, vector<1x2x128xf32>
    %6 = vector.shape_cast %5 : vector<1x2x128xf32> to vector<2x128xf32>
    %c0_6 = arith.constant 0 : index
    %c0_7 = arith.constant 0 : index
    %7 = vector.load %arg6[%c0_6, %c0_7] : memref<1x1xf32, #tpu.memory_space<vmem>>, vector<1x1xf32>
    %c0_8 = arith.constant 0 : index
    %c0_9 = arith.constant 0 : index
    %8 = vector.load %arg7[%c0_8, %c0_9] : memref<1x1xf32, #tpu.memory_space<vmem>>, vector<1x1xf32>
    %c2_i32 = arith.constant 2 : i32
    %9 = arith.muli %arg1, %c2_i32 : i32
    %10 = tpu.iota {dimensions = array<i32: 0>} : vector<2x128xi32>
    %11 = vector.broadcast %9 : i32 to vector<2x128xi32>
    %12 = arith.addi %10, %11 : vector<2x128xi32>
    %13 = tpu.iota {dimensions = array<i32: 1>} : vector<2x128xi32>
    %c128_i32 = arith.constant 128 : i32
    %14 = vector.broadcast %c128_i32 : i32 to vector<2x128xi32>
    %15 = arith.muli %12, %14 : vector<2x128xi32>
    %16 = arith.addi %15, %13 : vector<2x128xi32>
    %17 = arith.sitofp %16 : vector<2x128xi32> to vector<2x128xf32>
    %cst = arith.constant 6.250000e-02 : f32
    %18 = vector.broadcast %cst : f32 to vector<2x128xf32>
    %19 = arith.mulf %17, %18 : vector<2x128xf32>
    %20 = math.floor %19 : vector<2x128xf32>
    %cst_10 = arith.constant 1.600000e+01 : f32
    %21 = vector.broadcast %cst_10 : f32 to vector<2x128xf32>
    %22 = arith.mulf %20, %21 : vector<2x128xf32>
    %23 = arith.subf %17, %22 : vector<2x128xf32>
    %24 = vector.broadcast %7 : vector<1x1xf32> to vector<2x128xf32>
    %25 = arith.subf %20, %24 : vector<2x128xf32>
    %26 = vector.broadcast %8 : vector<1x1xf32> to vector<2x128xf32>
    %27 = arith.subf %23, %26 : vector<2x128xf32>
    %28 = arith.mulf %25, %25 : vector<2x128xf32>
    %29 = arith.mulf %27, %27 : vector<2x128xf32>
    %30 = arith.addf %28, %29 : vector<2x128xf32>
    %31 = math.sqrt %30 : vector<2x128xf32>
    %cst_11 = arith.constant 1.000000e+00 : f32
    %32 = vector.broadcast %cst_11 : f32 to vector<2x128xf32>
    %33 = arith.addf %31, %32 : vector<2x128xf32>
    %34 = tpu.reciprocal %33 {approx = true} : vector<2x128xf32> -> vector<2x128xf32>
    %35 = math.log %4 : vector<2x128xf32>
    %cst_12 = arith.constant -1.000000e+02 : f32
    %36 = vector.broadcast %cst_12 : f32 to vector<2x128xf32>
    %37 = arith.maximumf %35, %36 : vector<2x128xf32>
    %cst_13 = arith.constant 1.000000e+00 : f32
    %38 = vector.broadcast %cst_13 : f32 to vector<2x128xf32>
    %39 = arith.subf %38, %4 : vector<2x128xf32>
    %40 = math.log %39 : vector<2x128xf32>
    %cst_14 = arith.constant -1.000000e+02 : f32
    %41 = vector.broadcast %cst_14 : f32 to vector<2x128xf32>
    %42 = arith.maximumf %40, %41 : vector<2x128xf32>
    %43 = arith.mulf %6, %37 : vector<2x128xf32>
    %cst_15 = arith.constant 1.000000e+00 : f32
    %44 = vector.broadcast %cst_15 : f32 to vector<2x128xf32>
    %45 = arith.subf %44, %6 : vector<2x128xf32>
    %46 = arith.mulf %45, %42 : vector<2x128xf32>
    %47 = arith.addf %43, %46 : vector<2x128xf32>
    %cst_16 = arith.constant 0.000000e+00 : f32
    %48 = vector.broadcast %cst_16 : f32 to vector<2x128xf32>
    %49 = arith.subf %48, %47 : vector<2x128xf32>
    %c0_17 = arith.constant 0 : index
    %c0_18 = arith.constant 0 : index
    %50 = vector.load %arg5[%c0_17, %c0_18] : memref<1x128xf32, #tpu.memory_space<vmem>>, vector<1x128xf32>
    %51 = arith.mulf %34, %49 : vector<2x128xf32>
    %cst_19 = arith.constant dense<0.000000e+00> : vector<128xf32>
    %52 = vector.multi_reduction <add>, %51, %cst_19 [0] : vector<2x128xf32> to vector<128xf32>
    %53 = vector.shape_cast %52 : vector<128xf32> to vector<1x128xf32>
    %cst_20 = arith.constant dense<0.000000e+00> : vector<1xf32>
    %54 = vector.multi_reduction <add>, %53, %cst_20 [1] : vector<1x128xf32> to vector<1xf32>
    %55 = vector.shape_cast %54 : vector<1xf32> to vector<1x1xf32>
    %56 = vector.broadcast %55 : vector<1x1xf32> to vector<1x128xf32>
    %57 = arith.addf %50, %56 : vector<1x128xf32>
    %c0_21 = arith.constant 0 : index
    %c0_22 = arith.constant 0 : index
    %58 = vector.load %arg5[%c0_21, %c0_22] : memref<1x128xf32, #tpu.memory_space<vmem>>, vector<1x128xf32>
    tpu.vector_store %arg5[%c0_21, %c0_22], %57 {strides = array<i32>} : memref<1x128xf32, #tpu.memory_space<vmem>>, vector<1x128xf32>,
    %c0_i32_23 = arith.constant 0 : i32
    %59 = arith.cmpi eq, %arg1, %c0_i32_23 : i32
    %60 = arith.extui %59 : i1 to i32
    %c0_i32_24 = arith.constant 0 : i32
    %61 = arith.cmpi ne, %60, %c0_i32_24 : i32
    scf.if %61 {
      %c0_25 = arith.constant 0 : index
      %c0_26 = arith.constant 0 : index
      %62 = vector.load %arg5[%c0_25, %c0_26] : memref<1x128xf32, #tpu.memory_space<vmem>>, vector<1x128xf32>
      %c0_27 = arith.constant 0 : index
      %c0_28 = arith.constant 0 : index
      %c0_29 = arith.constant 0 : index
      %63 = vector.load %arg4[%c0_27, %c0_28, %c0_29] : memref<1x1x128xf32, #tpu.memory_space<vmem>>, vector<1x1x128xf32>
      %64 = vector.shape_cast %63 : vector<1x1x128xf32> to vector<1x128xf32>
      %65 = vector.shape_cast %62 : vector<1x128xf32> to vector<1x1x128xf32>
      tpu.vector_store %arg4[%c0_27, %c0_28, %c0_29], %65 {strides = array<i32>} : memref<1x1x128xf32, #tpu.memory_space<vmem>>, vector<1x1x128xf32>,
    } else {
    }
    return
  }
  func.func @transform_0(%arg0: i32, %arg1: i32) -> (i32, i32, i32) {
    %c0_i32 = arith.constant 0 : i32
    %c0_i32_0 = arith.constant 0 : i32
    return %arg0, %arg1, %c0_i32 : i32, i32, i32
  }
  func.func @transform_1(%arg0: i32, %arg1: i32) -> (i32, i32, i32) {
    %c0_i32 = arith.constant 0 : i32
    %c0_i32_0 = arith.constant 0 : i32
    %c0_i32_1 = arith.constant 0 : i32
    return %arg0, %c0_i32, %c0_i32_0 : i32, i32, i32
  }
  func.func @transform_2(%arg0: i32, %arg1: i32) -> (i32, i32, i32) {
    %c0_i32 = arith.constant 0 : i32
    %c0_i32_0 = arith.constant 0 : i32
    %c0_i32_1 = arith.constant 0 : i32
    return %arg0, %c0_i32, %c0_i32_0 : i32, i32, i32
  }
}

</mosaic_0001>

<llo_original>
// kernel: floss.1
$region0: #{floss.1}
  #allocation0 [shape = 'u32[]', space=smem, size = 0x4, offset = 0x4, fixed_abs, tag = 'smem constant byte address 0x4 - core index']
  #allocation1 [shape = 'u32[144,128]{1,0:T(1,128)}', space=vmem, size = 0x12000, scoped, tag = 'internal scratch']
  #allocation2 [shape = 'f32[1,128]{1,0:T(1,128)}', space=vmem, size = 0x200, scoped, tag = 'scratch operand']
  #allocation3 [shape = 'f32[1,1]{1,0:T(1,128)}', space=vmem, size = 0x200, scoped, tag = 'scratch operand']
  #allocation4 [shape = 'f32[1,1]{1,0:T(1,128)}', space=vmem, size = 0x200, scoped, tag = 'scratch operand']
  %s0 = inlined_call_operand.hbm [shape: f32[2,2,128], index: 0, kind: input, shape index: {}]
  %s1 = inlined_call_operand.hbm [shape: f32[2,2,128], index: 1, kind: input, shape index: {}]
  %s2 = inlined_call_operand.hbm [shape: f32[2,1,128], index: 2, kind: output, shape index: {}]
  %s3 = sld [smem:[#allocation0]]
  $region57: #{floss.1} parent=0
    _
  %s5 = ssub.s32 1, %s3
  %s6 = scalar_select 0, %s5, %s3
  $region1: #{floss.1} parent=0
    #allocation5 [shape = 'u8[2048]{0}', space=vmem, size = 0x800, scoped, tag = 'input window, operand 0']
    #allocation6 [shape = 's32[2]{0}', space=sflag, size = 0x8, scoped, tag = 'scoped memory for floss.1']
    #allocation7 [shape = 's32[2]{0}', space=sflag, size = 0x8, scoped, tag = 'scoped memory for floss.1']
    #allocation8 [shape = 'u8[2048]{0}', space=vmem, size = 0x800, scoped, tag = 'input window, operand 1']
    #allocation9 [shape = 's32[2]{0}', space=sflag, size = 0x8, scoped, tag = 'scoped memory for floss.1']
    #allocation10 [shape = 'u8[1024]{0}', space=vmem, size = 0x400, scoped, tag = 'output window, operand 0']
    %7 = vsyncpa [#allocation6], 0
    %s8 = scalar_lea.sflag [#allocation6], 1
    %9 = vsyncpa %s8, 0
    %10 = vsyncpa [#allocation9], 0
    %s11 = scalar_lea.sflag [#allocation9], 1
    %12 = vsyncpa %s11, 0
    %13 = vsyncpa [#allocation7], 0
    %s14 = scalar_lea.sflag [#allocation7], 1
    %15 = vsyncpa %s14, 0
    loop: start=0, step=1, limit=4
    $region2: #{floss.1} parent=1 // loop_pre_header
      _
    $region3: #{floss.1} parent=1 // loop_header
      %s17 = sphi 0, %s21
      %p18 = scmp.ge.s32.totalorder %s17, 4
      %s24 = sphi 0, %s36
      %s25 = sphi 0, %s32
      %s26 = sphi 0, %s24
      %s27 = sphi 0, %s25
      %s28 = sphi 0, %s26
      %s29 = sphi 0, %s27
      %s41 = sphi 0, %s43
      %s44 = sphi 0, %s41
      %s45 = sphi 0, %s44
      %s61 = sphi 0, %s45
      %s67 = sphi 0, %s69
      %s70 = sphi 0, %s67
      %s71 = sphi 0, %s70
      %s87 = sphi 0, %s71
      %s93 = sphi 0, %s95
      %s96 = sphi 0, %s93
      %s97 = sphi 0, %s96
      %s113 = sphi 0, %s97
    $region4: #{floss.1} parent=1 // loop_header_branch
      %20 = sbr.rel (%p18) target = $region8
    $region5: #{floss.1} parent=1 // loop_body
      %s22 = ssub.s32 %s17, 1
      %s23 = ssub.s32 %s17, 2
      %s30 = sadd.s32 1, %s25
      %p31 = scmp.ge.s32.totalorder %s30, 1
      %s32 = scalar_select %p31, 0, %s30
      %s33 = sadd.s32 1, %s24
      %s34 = scalar_select %p31, %s33, %s24
      %p35 = scmp.ge.s32.totalorder %s34, 2
      %s36 = scalar_select %p35, 0, %s34
      %s37 = ssub.s32 %s24, %s36
      %s38 = ssub.s32 %s25, %s32
      %s39 = sor.u32 %s37, %s38
      %p40 = scmp.eq.s32.totalorder %s39, 0
      %s42 = sadd.s32 %s41, 1
      %s43 = scalar_select %p40, %s41, %s42
      %p46 = pneg %p40
      %p47 = scmp.eq.s32.totalorder %s17, 1
      %p48 = por %p46, %p47
      %p49 = scmp.ne.s32.totalorder %s41, %s44
      %p50 = scmp.eq.s32.totalorder %s17, 0
      %p51 = por %p49, %p50
      %p52 = scmp.ne.s32.totalorder %s41, %s44
      %p53 = scmp.eq.s32.totalorder %s22, 1
      %p54 = por %p52, %p53
      %p55 = scmp.ne.s32.totalorder %s44, %s45
      %p56 = scmp.eq.s32.totalorder %s22, 0
      %p57 = por %p55, %p56
      %p58 = scmp.ne.s32.totalorder %s44, %s45
      %p59 = scmp.eq.s32.totalorder %s23, 1
      %p60 = por %p58, %p59
      %p62 = scmp.ne.s32.totalorder %s45, %s61
      %p63 = scmp.eq.s32.totalorder %s23, 0
      %p64 = por %p62, %p63
      %s65 = ssub.s32 %s24, %s36
      %p66 = scmp.eq.s32.totalorder %s65, 0
      %s68 = sadd.s32 %s67, 1
      %s69 = scalar_select %p66, %s67, %s68
      %p72 = pneg %p66
      %p73 = scmp.eq.s32.totalorder %s17, 1
      %p74 = por %p72, %p73
      %p75 = scmp.ne.s32.totalorder %s67, %s70
      %p76 = scmp.eq.s32.totalorder %s17, 0
      %p77 = por %p75, %p76
      %p78 = scmp.ne.s32.totalorder %s67, %s70
      %p79 = scmp.eq.s32.totalorder %s22, 1
      %p80 = por %p78, %p79
      %p81 = scmp.ne.s32.totalorder %s70, %s71
      %p82 = scmp.eq.s32.totalorder %s22, 0
      %p83 = por %p81, %p82
      %p84 = scmp.ne.s32.totalorder %s70, %s71
      %p85 = scmp.eq.s32.totalorder %s23, 1
      %p86 = por %p84, %p85
      %p88 = scmp.ne.s32.totalorder %s71, %s87
      %p89 = scmp.eq.s32.totalorder %s23, 0
      %p90 = por %p88, %p89
      %s91 = ssub.s32 %s24, %s36
      %p92 = scmp.eq.s32.totalorder %s91, 0
      %s94 = sadd.s32 %s93, 1
      %s95 = scalar_select %p92, %s93, %s94
      %p98 = pneg %p92
      %p99 = scmp.eq.s32.totalorder %s17, 1
      %p100 = por %p98, %p99
      %p101 = scmp.ne.s32.totalorder %s93, %s96
      %p102 = scmp.eq.s32.totalorder %s17, 0
      %p103 = por %p101, %p102
      %p104 = scmp.ne.s32.totalorder %s93, %s96
      %p105 = scmp.eq.s32.totalorder %s22, 1
      %p106 = por %p104, %p105
      %p107 = scmp.ne.s32.totalorder %s96, %s97
      %p108 = scmp.eq.s32.totalorder %s22, 0
      %p109 = por %p107, %p108
      %p110 = scmp.ne.s32.totalorder %s96, %s97
      %p111 = scmp.eq.s32.totalorder %s23, 1
      %p112 = por %p110, %p111
      %p114 = scmp.ne.s32.totalorder %s97, %s113
      %p115 = scmp.eq.s32.totalorder %s23, 0
      %p116 = por %p114, %p115
      %p117 = scmp.le.s32.totalorder 1, %s17
      %p118 = scmp.lt.s32.totalorder %s17, 3
      %p119 = pnand %p117, %p118
      %p120 = pneg %p119
      // Predicated region
      $region9: #{floss.1} parent=5 // pred_check
        _
      $region10: #{floss.1} parent=5 // pred_check_branch
        %122 = sbr.rel (%p119) target = $region12
      $region11: #{floss.1} parent=5 // pred_region
        %s123 = ssub.s32 %s17, 1
      $region12: #{floss.1} parent=5 // pred_fallthru
        _
      %p124 = scmp.lt.s32.totalorder %s17, 2
      // Predicated region
      $region13: #{floss.1} parent=5 // pred_check
        %p125 = pneg %p124
      $region14: #{floss.1} parent=5 // pred_check_branch
        %127 = sbr.rel (%p125) target = $region16
      $region15: #{floss.1} parent=5 // pred_region
        // Predicated region
        $region17: #{floss.1} parent=15 // pred_check
          %p128 = pneg %p51
        $region18: #{floss.1} parent=15 // pred_check_branch
          %130 = sbr.rel (%p128) target = $region20
        $region19: #{floss.1} parent=15 // pred_region
          %s131 = sand.u32 %s41, 1
          %s132 = scalar_lea.sflag [#allocation6], %s131
          %s133 = sand.u32 %s41, 1
          %s134 = smul.addr %s133, 2
          %s135 = scalar_lea.vmem [#allocation5], %s134
          %s137 = ssub.s32 32, 32
          %138 = vsyncadd %s132, %s137
          %s139 = sadd.s32 %s25, %s24
          %s140 = smul.addr %s139, 32
          %s141 = scalar_lea.hbm %s0, %s140
          %s143 = sshll.u32 %s135, 4
          %s144 = int_to_ptr.vmem [resolvable:$true] %s143
          %146 = dma.hbm_to_vmem [thread:$0]  %s141, 32, %s144, %s132
        $region20: #{floss.1} parent=15 // pred_fallthru
          _
        // Predicated region
        $region21: #{floss.1} parent=15 // pred_check
          %p147 = pneg %p77
        $region22: #{floss.1} parent=15 // pred_check_branch
          %149 = sbr.rel (%p147) target = $region24
        $region23: #{floss.1} parent=15 // pred_region
          %s150 = sand.u32 %s67, 1
          %s151 = scalar_lea.sflag [#allocation9], %s150
          %s152 = sand.u32 %s67, 1
          %s153 = smul.addr %s152, 2
          %s154 = scalar_lea.vmem [#allocation8], %s153
          %s156 = ssub.s32 32, 32
          %157 = vsyncadd %s151, %s156
          %s158 = smul.addr %s24, 32
          %s159 = scalar_lea.hbm %s1, %s158
          %s161 = sshll.u32 %s154, 4
          %s162 = int_to_ptr.vmem [resolvable:$true] %s161
          %164 = dma.hbm_to_vmem [thread:$0]  %s159, 32, %s162, %s151
        $region24: #{floss.1} parent=15 // pred_fallthru
          _
      $region16: #{floss.1} parent=5 // pred_fallthru
        _
      %p165 = scmp.le.s32.totalorder 1, %s17
      %p166 = scmp.lt.s32.totalorder %s17, 3
      %p167 = pnand %p165, %p166
      %p168 = pneg %p167
      // Predicated region
      $region25: #{floss.1} parent=5 // pred_check
        _
      $region26: #{floss.1} parent=5 // pred_check_branch
        %170 = sbr.rel (%p167) target = $region28
      $region27: #{floss.1} parent=5 // pred_region
        %s171 = ssub.s32 %s17, 1
        %s172 = sand.u32 %s44, 1
        %s173 = scalar_lea.sflag [#allocation6], %s172
        %s174 = sand.u32 %s44, 1
        %s175 = smul.addr %s174, 2
        %s176 = scalar_lea.vmem [#allocation5], %s175
        // Predicated region
        $region29: #{floss.1} parent=27 // pred_check
          %p177 = pneg %p57
        $region30: #{floss.1} parent=27 // pred_check_branch
          %179 = sbr.rel (%p177) target = $region32
        $region31: #{floss.1} parent=27 // pred_region
          %180 = dma.done %s173, 32
        $region32: #{floss.1} parent=27 // pred_fallthru
          _
        %s181 = sand.u32 %s70, 1
        %s182 = scalar_lea.sflag [#allocation9], %s181
        %s183 = sand.u32 %s70, 1
        %s184 = smul.addr %s183, 2
        %s185 = scalar_lea.vmem [#allocation8], %s184
        // Predicated region
        $region33: #{floss.1} parent=27 // pred_check
          %p186 = pneg %p83
        $region34: #{floss.1} parent=27 // pred_check_branch
          %188 = sbr.rel (%p186) target = $region36
        $region35: #{floss.1} parent=27 // pred_region
          %189 = dma.done %s182, 32
        $region36: #{floss.1} parent=27 // pred_fallthru
          _
        %s190 = sand.u32 %s44, 1
        %s191 = scalar_lea.sflag [#allocation6], %s190
        %s192 = sand.u32 %s44, 1
        %s193 = smul.addr %s192, 2
        %s194 = scalar_lea.vmem [#allocation5], %s193
        %p195 = pneg %p57
        %p196 = pneg %p54
        %s197 = sand.u32 %s70, 1
        %s198 = scalar_lea.sflag [#allocation9], %s197
        %s199 = sand.u32 %s70, 1
        %s200 = smul.addr %s199, 2
        %s201 = scalar_lea.vmem [#allocation8], %s200
        %p202 = pneg %p83
        %p203 = pneg %p80
        %p204 = pneg %p109
        %p205 = pneg %p106
        %s206 = sand.u32 %s96, 1
        %s207 = scalar_lea.sflag [#allocation7], %s206
        %s208 = sand.u32 %s96, 1
        %s209 = scalar_lea.vmem [#allocation10], %s208
        %p210 = scmp.eq.s32.totalorder %s27, 0
        // Predicated region
        $region37: #{floss.1} parent=27 // pred_check
          %p211 = pneg %p210
        $region38: #{floss.1} parent=27 // pred_check_branch
          %213 = sbr.rel (%p211) target = $region40
        $region39: #{floss.1} parent=27 // pred_region
          %214 = vst [vmem:[#allocation2] sm:$0x1] 0.0
          %v215 = vld [vmem:[%s185] sm:$0x3]
          %vm216 = vcmask 1041408
          %v217 = vsel %vm216, %v215, -inf
          %v218 = vrot.slane %v217, 4
          %v219 = vmax.f32 %v217, %v218
          %v220 = vrot.slane %v219, 2
          %v221 = vmax.f32 %v219, %v220
          %v222 = vrot.slane %v221, 1
          %v223 = vmax.f32 %v221, %v222
          %224 = vmax.xlane.f32.xlu0 %v223
          %v225 = vpop.xlane.xlu0 %224
          %vm226 = vcmp.eq.f32.partialorder %v215, %v225
          %v227 = vsel %vm226, 1, 0
          %v228 = vcvt.s32.f32 %v227
          %v229 = vlaneseq
          %v230 = vshrl.u32 %v229, 7
          %v231 = vlaneseq
          %v232 = vand.u32 %v231, 127
          %v233 = vmul.u32 %v230, 128
          %v234 = vadd.s32 %v233, %v232
          %v235 = vcvt.s32.f32 %v234
          %v236 = vmul.f32 %v235, 0.0625
          %v237 = vfloor.f32 %v236
          %v238 = vmul.f32 %v237, 16.0
          %v239 = vsub.f32 %v235, %v238
          %v240 = vsel %vm216, %v228, 0.0
          %v241 = vrot.slane %v240, 4
          %v242 = vadd.f32 %v240, %v241
          %v243 = vrot.slane %v242, 2
          %v244 = vadd.f32 %v242, %v243
          %v245 = vrot.slane %v244, 1
          %v246 = vadd.f32 %v244, %v245
          %247 = vadd.xlane.f32.xlu0 %v246
          %v248 = vpop.xlane.xlu0 %247
          %v249 = vmul.f32 %v228, %v237
          %v250 = vsel %vm216, %v249, 0.0
          %v251 = vrot.slane %v250, 4
          %v252 = vadd.f32 %v250, %v251
          %v253 = vrot.slane %v252, 2
          %v254 = vadd.f32 %v252, %v253
          %v255 = vrot.slane %v254, 1
          %v256 = vadd.f32 %v254, %v255
          %257 = vadd.xlane.f32.xlu0 %v256
          %v258 = vpop.xlane.xlu0 %257
          %v259 = vmul.f32 %v228, %v239
          %v260 = vsel %vm216, %v259, 0.0
          %v261 = vrot.slane %v260, 4
          %v262 = vadd.f32 %v260, %v261
          %v263 = vrot.slane %v262, 2
          %v264 = vadd.f32 %v262, %v263
          %v265 = vrot.slane %v264, 1
          %v266 = vadd.f32 %v264, %v265
          %267 = vadd.xlane.f32.xlu0 %v266
          %v268 = vpop.xlane.xlu0 %267
          %v269 = vrcp.pop %v248
          %v270 = vmul.f32 1.0, %v269
          %v271 = vmul.f32 %v258, %v270
          %vm272 = vcmask 0
          %273 = vst.msk [vmem:[#allocation3] sm:$0x1] %vm272, %v271
          %v274 = vmul.f32 %v268, %v270
          %275 = vst.msk [vmem:[#allocation4] sm:$0x1] %vm272, %v274
        $region40: #{floss.1} parent=27 // pred_fallthru
          _
        %v276 = vld [vmem:[%s176] sm:$0x3]
        %v277 = vld [vmem:[%s185] sm:$0x3]
        %v278 = vld [vmem:[#allocation3] sm:$0x1]
        %v279 = vld [vmem:[#allocation4] sm:$0x1]
        %s280 = smul.u32 %s27, 2
        %v281 = vlaneseq
        %v282 = vshrl.u32 %v281, 7
        %v283 = vstv %s280
        %v284 = vadd.s32 %v282, %v283
        %v285 = vlaneseq
        %v286 = vand.u32 %v285, 127
        %v287 = vmul.u32 %v284, 128
        %v288 = vadd.s32 %v287, %v286
        %v289 = vcvt.s32.f32 %v288
        %v290 = vmul.f32 %v289, 0.0625
        %v291 = vfloor.f32 %v290
        %v292 = vmul.f32 %v291, 16.0
        %v293 = vsub.f32 %v289, %v292
        %v295 = vlaneseq
        %v296 = vshrl.u32 %v295, 7
        %v297 = vsub.s32 0, %v296
        %v298 = vrot.slane %v278, %v297
        %299 = vset.pattern.permute.xlu0 0
        %300 = vperm.xlu0 %299, %v298
        %v301 = vpop.permute.xlu0 %300
        %v303 = vsub.f32 %v291, %v301
        %v305 = vlaneseq
        %v306 = vshrl.u32 %v305, 7
        %v307 = vsub.s32 0, %v306
        %v308 = vrot.slane %v279, %v307
        %309 = vset.pattern.permute.xlu0 0
        %310 = vperm.xlu0 %309, %v308
        %v311 = vpop.permute.xlu0 %310
        %v313 = vsub.f32 %v293, %v311
        %v314 = vmul.f32 %v303, %v303
        %v315 = vmul.f32 %v313, %v313
        %v316 = vadd.f32 %v314, %v315
        %v317 = vrsqrt.pop %v316
        %v318 = vmul.f32 %v316, %v317
        %vm319 = vcmp.eq.f32.partialorder %v316, inf
        %v320 = vsel %vm319, %v316, %v318
        %vm321 = vcmp.eq.f32.partialorder %v316, 0.0
        %v322 = vand.u32 %v316, 2147483648
        %v323 = vsel %vm321, %v322, %v320
        %v324 = vadd.f32 %v323, 1.0
        %v325 = vrcp.pop %v324
        %v326 = vlog2.pop %v276
        %v327 = vmul.f32 %v326, 0.6931472
        %v328 = vmax.f32 %v327, -100.0
        %v329 = vsub.f32 1.0, %v276
        %v330 = vlog2.pop %v329
        %v331 = vmul.f32 %v330, 0.6931472
        %v332 = vmax.f32 %v331, -100.0
        %v333 = vmul.f32 %v277, %v328
        %v334 = vsub.f32 1.0, %v277
        %v335 = vmul.f32 %v334, %v332
        %v336 = vadd.f32 %v333, %v335
        %v337 = vsub.f32 0.0, %v336
        %v338 = vld [vmem:[#allocation2] sm:$0x1]
        %v339 = vmul.f32 %v325, %v337
        %vm340 = vcmask 1041408
        %v341 = vsel %vm340, %v339, 0.0
        %v342 = vrot.slane %v341, 4
        %v343 = vadd.f32 %v341, %v342
        %v344 = vrot.slane %v343, 2
        %v345 = vadd.f32 %v343, %v344
        %v346 = vrot.slane %v345, 1
        %v347 = vadd.f32 %v345, %v346
        %348 = vadd.xlane.f32.xlu0 %v347
        %v349 = vpop.xlane.xlu0 %348
        %v350 = vadd.f32 %v338, %v349
        %351 = vst [vmem:[#allocation2] sm:$0x1] %v350
        // Predicated region
        $region41: #{floss.1} parent=27 // pred_check
          %p352 = pneg %p210
        $region42: #{floss.1} parent=27 // pred_check_branch
          %354 = sbr.rel (%p352) target = $region44
        $region43: #{floss.1} parent=27 // pred_region
          %v355 = vld [vmem:[#allocation2] sm:$0x1]
          %356 = vst [vmem:[%s209] sm:$0x1] %v355
        $region44: #{floss.1} parent=27 // pred_fallthru
          _
        %s357 = sand.u32 %s96, 1
        %s358 = scalar_lea.sflag [#allocation7], %s357
        %s359 = sand.u32 %s96, 1
        %s360 = scalar_lea.vmem [#allocation10], %s359
        // Predicated region
        $region45: #{floss.1} parent=27 // pred_check
          %p361 = pneg %p106
        $region46: #{floss.1} parent=27 // pred_check_branch
          %363 = sbr.rel (%p361) target = $region48
        $region47: #{floss.1} parent=27 // pred_region
          %s365 = ssub.s32 16, 16
          %366 = vsyncadd %s358, %s365
          %s367 = smul.addr %s26, 16
          %s368 = scalar_lea.hbm %s2, %s367
          %s370 = sshll.u32 %s360, 4
          %s371 = int_to_ptr.vmem [resolvable:$true] %s370
          %373 = dma.vmem_to_hbm [thread:$0]  %s371, 16, %s368, %s358
        $region48: #{floss.1} parent=27 // pred_fallthru
          _
      $region28: #{floss.1} parent=5 // pred_fallthru
        _
      %p374 = scmp.le.s32.totalorder 2, %s17
      // Predicated region
      $region49: #{floss.1} parent=5 // pred_check
        %p375 = pneg %p374
      $region50: #{floss.1} parent=5 // pred_check_branch
        %377 = sbr.rel (%p375) target = $region52
      $region51: #{floss.1} parent=5 // pred_region
        %s378 = ssub.s32 %s17, 2
        // Predicated region
        $region53: #{floss.1} parent=51 // pred_check
          %p379 = pneg %p112
        $region54: #{floss.1} parent=51 // pred_check_branch
          %381 = sbr.rel (%p379) target = $region56
        $region55: #{floss.1} parent=51 // pred_region
          %s382 = sand.u32 %s97, 1
          %s383 = scalar_lea.sflag [#allocation7], %s382
          %s384 = sand.u32 %s97, 1
          %s385 = scalar_lea.vmem [#allocation10], %s384
          %386 = dma.done %s383, 16
        $region56: #{floss.1} parent=51 // pred_fallthru
          _
      $region52: #{floss.1} parent=5 // pred_fallthru
        _
    $region6: #{floss.1} parent=1 // loop_footer
      %s21 = sadd.s32 1, %s17
    $region7: #{floss.1} parent=1 // loop_footer_branch
      %16 = sbr.rel target = $region3
    $region8: #{floss.1} parent=1 // loop_exit
      _
    %387 = vsyncpa [#allocation6], 1
    %s388 = scalar_lea.sflag [#allocation6], 1
    %389 = vsyncpa %s388, 1
    %390 = vsyncpa [#allocation9], 1
    %s391 = scalar_lea.sflag [#allocation9], 1
    %392 = vsyncpa %s391, 1
    %393 = vsyncpa [#allocation7], 1
    %s394 = scalar_lea.sflag [#allocation7], 1
    %395 = vsyncpa %s394, 1

</llo_original>
